<compile_context>
chip_gen: v7x
topology: tpu7x:2x2x1
jax: 0.10.0
libtpu: 0.0.40
codegen_flags: <defaults>
</compile_context>

<pallas_src>
import functools

import jax
import jax.numpy as jnp
from jax.experimental import pallas as pl
from jax.experimental.pallas import tpu as pltpu

EPS = 1e-5


def _round_up(v, m):
    return ((v + m - 1) // m) * m


def _sublane(dtype):
    # Packed-sublane multiple for the second-to-last block dim.
    return {4: 8, 2: 16, 1: 32}.get(jnp.dtype(dtype).itemsize, 8)


def _prenorm_kernel(x_ref, gamma_ref, beta_ref, w_ref, b_ref, o_ref, xn_ref,
                    *, d_real, d_pad, eps):
    """One (tm, tn) output tile of Linear(LayerNorm(x)).

    Grid = (row tiles [parallel], W column tiles [arbitrary]).  LayerNorm
    statistics are computed once per row tile (at column step 0) and the
    normalized activations are cached in `xn_ref` (VMEM scratch, in W's
    dtype) for reuse across column steps.

    x_ref:     (tm, Dp)   input rows (lanes >= d_real are zero-padded)
    gamma_ref: (1,  Dp)   LayerNorm weight (zero in padded lanes)
    beta_ref:  (1,  Dp)   LayerNorm bias   (zero in padded lanes)
    w_ref:     (Dp, tn)   Linear weight column block (zero-padded rows)
    b_ref:     (1,  tn)   Linear bias column block
    o_ref:     (tm, tn)   output tile
    xn_ref:    (tm, Dp)   scratch: normalized activations in W's dtype
    """
    j = pl.program_id(1)

    @pl.when(j == 0)
    def _():
        x = x_ref[...].astype(jnp.float32)
        inv_d = jnp.float32(1.0 / d_real)
        mean = jnp.sum(x, axis=-1, keepdims=True) * inv_d
        centered = x - mean
        if d_pad != d_real:
            # Zero the padded lanes so they do not pollute the (two-pass)
            # variance; they also end up as exact zeros in xn.
            lane = jax.lax.broadcasted_iota(jnp.int32, centered.shape, 1)
            centered = jnp.where(lane < d_real, centered, 0.0)
        var = jnp.sum(centered * centered, axis=-1, keepdims=True) * inv_d
        xn = centered * jax.lax.rsqrt(var + jnp.float32(eps))
        xn = (xn * gamma_ref[...].astype(jnp.float32)
              + beta_ref[...].astype(jnp.float32))
        xn_ref[...] = xn.astype(xn_ref.dtype)

    # fn: Linear(dim, dim).  xn is already stored in W's dtype, so bf16
    # weights use the native bf16 MXU path; accumulation stays f32.
    # TODO(synk): `fn` is an arbitrary callable in the PyTorch module; a
    # Linear layer is used here as a concrete, deterministic stand-in.
    out = jnp.dot(xn_ref[...], w_ref[...], preferred_element_type=jnp.float32)
    out = out + b_ref[...].astype(jnp.float32)
    o_ref[...] = out.astype(o_ref.dtype)


def _plan(rows, d, x_dtype, w_dtype, tile_rows):
    """Static tiling plan: (dp, tm, tn, vmem_limit_bytes)."""
    xb = jnp.dtype(x_dtype).itemsize
    wb = jnp.dtype(w_dtype).itemsize
    sub = _sublane(x_dtype)
    dp = _round_up(d, 128)

    # Per-generation VMEM sizing (v5e/v6e: 128 MiB, v7x: 64 MiB per TC).
    vmem_cap, n_tc = 64 * 1024 * 1024, 1
    try:
        info = pltpu.get_tpu_info()
        vmem_cap = int(getattr(info, "vmem_capacity_bytes", vmem_cap))
        n_tc = int(getattr(info, "num_cores", 1) or 1)
    except Exception:
        pass  # conservative 64 MiB fallback is safe on every generation
    budget = int(vmem_cap * 0.70)       # what the tiles may use
    vmem_limit = int(vmem_cap * 0.78)   # scoped-VMEM limit, headroom kept

    def tile_bytes(tm_, tn_):
        xio = 2 * tm_ * dp * xb + 2 * tm_ * tn_ * xb   # x / out, double-buffered
        wgt = 2 * dp * tn_ * wb + 2 * tn_ * 4          # W column block + bias
        vec = 2 * 2 * dp * 4                           # gamma / beta
        scr = tm_ * dp * wb                            # xn scratch
        f32 = 3 * tm_ * dp * 4 + tm_ * tn_ * 4         # f32 intermediates + acc
        return xio + wgt + vec + scr + f32

    tm = min(_round_up(tile_rows, sub), _round_up(rows, sub))
    tn = dp
    # Keep the W column block within ~half the budget so tm can stay large.
    while tn > 128 and 2 * dp * tn * wb > budget // 2:
        tn = max(128, _round_up(tn // 2, 128))
    while tm > sub and tile_bytes(tm, tn) > budget:
        tm = max(sub, _round_up(tm // 2, sub))
    while tn > 128 and tile_bytes(tm, tn) > budget:
        tn = max(128, _round_up(tn // 2, 128))
    if tile_bytes(tm, tn) > budget:
        raise ValueError(
            f"PreNorm Pallas kernel does not fit VMEM: dim={d} (padded {dp}), "
            f"weight dtype={jnp.dtype(w_dtype).name}; minimal tile needs "
            f"{tile_bytes(sub, 128)} B > budget {budget} B. Use a narrower "
            f"weight dtype (bf16) or a smaller embedding dim.")

    # Megacore: on multi-TensorCore chips give the "parallel" row axis at
    # least one tile per core (no-op on single-TC v5e / v6e).
    if 1 < n_tc <= 2 and rows >= n_tc * sub:
        tm = min(tm, max(sub, _round_up(pl.cdiv(rows, n_tc), sub)))

    return dp, tm, tn, vmem_limit


@functools.partial(jax.jit, static_argnames=("plan",))
def _prenorm_call(x2, gamma, beta, w, b, plan):
    rows, d = x2.shape
    dp, tm, tn, vmem_limit = plan

    gamma2 = gamma.reshape(1, d)
    beta2 = beta.reshape(1, d)
    b2 = b.reshape(1, d)
    w2 = w
    if dp != d:
        # Lane padding only when D is not a multiple of 128 (exact: padded
        # gamma/beta/W/b lanes are zero).  Rows are never padded.
        pad = ((0, 0), (0, dp - d))
        x2 = jnp.pad(x2, pad)
        gamma2 = jnp.pad(gamma2, pad)
        beta2 = jnp.pad(beta2, pad)
        b2 = jnp.pad(b2, pad)
        w2 = jnp.pad(w, ((0, dp - d), (0, dp - d)))

    grid = (pl.cdiv(rows, tm), pl.cdiv(dp, tn))
    kernel = functools.partial(_prenorm_kernel, d_real=d, d_pad=dp, eps=EPS)

    out = pl.pallas_call(
        kernel,
        out_shape=jax.ShapeDtypeStruct((rows, dp), x2.dtype),
        grid_spec=pltpu.PrefetchScalarGridSpec(
            num_scalar_prefetch=0,
            grid=grid,
            in_specs=[
                # Note: could sweep pipeline_mode=pl.Buffered(3) for x on
                # 128 MiB parts once headroom is confirmed.
                pl.BlockSpec((tm, dp), lambda i, j: (i, 0)),   # x row tile
                pl.BlockSpec((1, dp), lambda i, j: (0, 0)),    # gamma
                pl.BlockSpec((1, dp), lambda i, j: (0, 0)),    # beta
                pl.BlockSpec((dp, tn), lambda i, j: (0, j)),   # W column block
                pl.BlockSpec((1, tn), lambda i, j: (0, j)),    # bias column block
            ],
            out_specs=pl.BlockSpec((tm, tn), lambda i, j: (i, j)),
            scratch_shapes=[pltpu.VMEM((tm, dp), w2.dtype)],   # xn cache
        ),
        compiler_params=pltpu.CompilerParams(
            dimension_semantics=("parallel", "arbitrary"),
            vmem_limit_bytes=vmem_limit,
        ),
    )(x2, gamma2, beta2, w2, b2)

    if dp != d:
        out = out[:, :d]
    return out


def prenorm(x, gamma, beta, w, b, *, tile_rows=512):
    """x: (B, N, D) -> (B, N, D), computing fn(LayerNorm(x)) with fn = Linear(D, D)."""
    B, N, D = x.shape
    plan = _plan(B * N, D, x.dtype, w.dtype, tile_rows)
    out2 = _prenorm_call(x.reshape(B * N, D), gamma, beta, w, b, plan=plan)
    return out2.reshape(B, N, D)


def reference(x, gamma, beta, w, b):
    xf = x.astype(jnp.float32)
    mean = jnp.mean(xf, axis=-1, keepdims=True)
    var = jnp.mean((xf - mean) ** 2, axis=-1, keepdims=True)
    xn = ((xf - mean) * jax.lax.rsqrt(var + EPS) * gamma.astype(jnp.float32)
          + beta.astype(jnp.float32))
    out = jnp.dot(xn.astype(w.dtype), w, preferred_element_type=jnp.float32)
    return (out + b.astype(jnp.float32)).astype(x.dtype)


if __name__ == "__main__":
    B, N, D = 2, 8, 32  # batch, sequence length, embedding dim

    key = jax.random.PRNGKey(0)
    kx, kw, kb = jax.random.split(key, 3)

    x = jax.random.normal(kx, (B, N, D), dtype=jnp.float32)

    # nn.LayerNorm(dim) default init: weight=1, bias=0
    gamma = jnp.ones((D,), dtype=jnp.float32)
    beta = jnp.zeros((D,), dtype=jnp.float32)

    # Deterministic init for the fn (Linear) parameters.
    w = jax.random.normal(kw, (D, D), dtype=jnp.float32) * 0.02
    b = jax.random.normal(kb, (D,), dtype=jnp.float32) * 0.02

    # 1) f32 weight path: exact check against the f32 reference.
    out = jax.block_until_ready(prenorm(x, gamma, beta, w, b))
    ref = reference(x, gamma, beta, w, b)
    assert out.shape == (B, N, D)
    assert jnp.allclose(out, ref, atol=1e-5, rtol=1e-5), "mismatch vs f32 reference"

    # 2) bf16 weight path (recommended on TPU: native MXU, f32 accumulation).
    w_bf16 = w.astype(jnp.bfloat16)
    out_bf = jax.block_until_ready(prenorm(x, gamma, beta, w_bf16, b))
    ref_bf = reference(x, gamma, beta, w_bf16, b)
    assert out_bf.shape == (B, N, D)
    assert jnp.allclose(out_bf, ref_bf, atol=5e-3, rtol=5e-3), "mismatch vs bf16 reference"

    print("KERNEL_OK")
</pallas_src>

<mosaic_0001>
module attributes {stable_mosaic.version = 11 : i64} {
  func.func @_prenorm_kernel(%arg0: i32, %arg1: i32, %arg2: memref<16x128xf32, #tpu.memory_space<vmem>>, %arg3: memref<1x128xf32, #tpu.memory_space<vmem>>, %arg4: memref<1x128xf32, #tpu.memory_space<vmem>>, %arg5: memref<128x128xf32, #tpu.memory_space<vmem>>, %arg6: memref<1x128xf32, #tpu.memory_space<vmem>>, %arg7: memref<16x128xf32, #tpu.memory_space<vmem>>, %arg8: memref<16x128xf32, #tpu.memory_space<vmem>>) attributes {dimension_semantics = [#tpu.dimension_semantics<parallel>, #tpu.dimension_semantics<arbitrary>], iteration_bounds = array<i64: 1, 1>, scalar_prefetch = 0 : i64, scratch_operands = 1 : i64, tpu.core_type = #tpu.core_type<tc>, window_params = [{transform_indices = @transform_0, window_bounds = array<i64: 16, 128>}, {pipeline_mode = #tpu.pipeline_mode<synchronous>, transform_indices = @transform_1, window_bounds = array<i64: 1, 128>}, {pipeline_mode = #tpu.pipeline_mode<synchronous>, transform_indices = @transform_2, window_bounds = array<i64: 1, 128>}, {transform_indices = @transform_3, window_bounds = array<i64: 128, 128>}, {transform_indices = @transform_4, window_bounds = array<i64: 1, 128>}, {transform_indices = @transform_5, window_bounds = array<i64: 16, 128>}]} {
    %c0_i32 = arith.constant 0 : i32
    %0 = arith.cmpi eq, %arg1, %c0_i32 : i32
    %1 = arith.extui %0 : i1 to i32
    %c0_i32_0 = arith.constant 0 : i32
    %2 = arith.cmpi ne, %1, %c0_i32_0 : i32
    scf.if %2 {
      %c0_8 = arith.constant 0 : index
      %c0_9 = arith.constant 0 : index
      %10 = vector.load %arg2[%c0_8, %c0_9] : memref<16x128xf32, #tpu.memory_space<vmem>>, vector<16x128xf32>
      %cst_10 = arith.constant dense<0.000000e+00> : vector<16xf32>
      %11 = vector.multi_reduction <add>, %10, %cst_10 [1] : vector<16x128xf32> to vector<16xf32>
      %12 = vector.shape_cast %11 : vector<16xf32> to vector<16x1xf32>
      %cst_11 = arith.constant 3.125000e-02 : f32
      %13 = vector.broadcast %cst_11 : f32 to vector<16x1xf32>
      %14 = arith.mulf %12, %13 : vector<16x1xf32>
      %15 = vector.broadcast %14 : vector<16x1xf32> to vector<16x128xf32>
      %16 = arith.subf %10, %15 : vector<16x128xf32>
      %17 = tpu.iota {dimensions = array<i32: 1>} : vector<16x128xi32>
      %c32_i32 = arith.constant 32 : i32
      %18 = vector.broadcast %c32_i32 : i32 to vector<16x128xi32>
      %19 = arith.cmpi slt, %17, %18 : vector<16x128xi32>
      %cst_12 = arith.constant 0.000000e+00 : f32
      %20 = vector.broadcast %cst_12 : f32 to vector<16x128xf32>
      %21 = arith.select %19, %16, %20 : vector<16x128xi1>, vector<16x128xf32>
      %22 = arith.mulf %21, %21 : vector<16x128xf32>
      %cst_13 = arith.constant dense<0.000000e+00> : vector<16xf32>
      %23 = vector.multi_reduction <add>, %22, %cst_13 [1] : vector<16x128xf32> to vector<16xf32>
      %24 = vector.shape_cast %23 : vector<16xf32> to vector<16x1xf32>
      %cst_14 = arith.constant 3.125000e-02 : f32
      %25 = vector.broadcast %cst_14 : f32 to vector<16x1xf32>
      %26 = arith.mulf %24, %25 : vector<16x1xf32>
      %cst_15 = arith.constant 9.99999974E-6 : f32
      %27 = vector.broadcast %cst_15 : f32 to vector<16x1xf32>
      %28 = arith.addf %26, %27 : vector<16x1xf32>
      %29 = math.rsqrt %28 : vector<16x1xf32>
      %30 = vector.broadcast %29 : vector<16x1xf32> to vector<16x128xf32>
      %31 = arith.mulf %21, %30 : vector<16x128xf32>
      %c0_16 = arith.constant 0 : index
      %c0_17 = arith.constant 0 : index
      %32 = vector.load %arg3[%c0_16, %c0_17] : memref<1x128xf32, #tpu.memory_space<vmem>>, vector<1x128xf32>
      %33 = vector.broadcast %32 : vector<1x128xf32> to vector<16x128xf32>
      %34 = arith.mulf %31, %33 : vector<16x128xf32>
      %c0_18 = arith.constant 0 : index
      %c0_19 = arith.constant 0 : index
      %35 = vector.load %arg4[%c0_18, %c0_19] : memref<1x128xf32, #tpu.memory_space<vmem>>, vector<1x128xf32>
      %36 = vector.broadcast %35 : vector<1x128xf32> to vector<16x128xf32>
      %37 = arith.addf %34, %36 : vector<16x128xf32>
      %c0_20 = arith.constant 0 : index
      %c0_21 = arith.constant 0 : index
      %38 = vector.load %arg8[%c0_20, %c0_21] : memref<16x128xf32, #tpu.memory_space<vmem>>, vector<16x128xf32>
      tpu.vector_store %arg8[%c0_20, %c0_21], %37 {strides = array<i32>} : memref<16x128xf32, #tpu.memory_space<vmem>>, vector<16x128xf32>,
    } else {
    }
    %c0 = arith.constant 0 : index
    %c0_1 = arith.constant 0 : index
    %3 = vector.load %arg8[%c0, %c0_1] : memref<16x128xf32, #tpu.memory_space<vmem>>, vector<16x128xf32>
    %c0_2 = arith.constant 0 : index
    %c0_3 = arith.constant 0 : index
    %4 = vector.load %arg5[%c0_2, %c0_3] : memref<128x128xf32, #tpu.memory_space<vmem>>, vector<128x128xf32>
    %cst = arith.constant dense<0.000000e+00> : vector<16x128xf32>
    %5 = tpu.matmul %3, %4, %cst {dimension_numbers = #tpu.dot_dimension_numbers<[1], [0], [0], [1], [0, 0, 1, 1], [], []>} : vector<16x128xf32>, vector<128x128xf32>, vector<16x128xf32> -> vector<16x128xf32>
    %c0_4 = arith.constant 0 : index
    %c0_5 = arith.constant 0 : index
    %6 = vector.load %arg6[%c0_4, %c0_5] : memref<1x128xf32, #tpu.memory_space<vmem>>, vector<1x128xf32>
    %7 = vector.broadcast %6 : vector<1x128xf32> to vector<16x128xf32>
    %8 = arith.addf %5, %7 : vector<16x128xf32>
    %c0_6 = arith.constant 0 : index
    %c0_7 = arith.constant 0 : index
    %9 = vector.load %arg7[%c0_6, %c0_7] : memref<16x128xf32, #tpu.memory_space<vmem>>, vector<16x128xf32>
    tpu.vector_store %arg7[%c0_6, %c0_7], %8 {strides = array<i32>} : memref<16x128xf32, #tpu.memory_space<vmem>>, vector<16x128xf32>,
    return
  }
  func.func @transform_0(%arg0: i32, %arg1: i32) -> (i32, i32) {
    %c0_i32 = arith.constant 0 : i32
    %c0_i32_0 = arith.constant 0 : i32
    return %arg0, %c0_i32 : i32, i32
  }
  func.func @transform_1(%arg0: i32, %arg1: i32) -> (i32, i32) {
    %c0_i32 = arith.constant 0 : i32
    %c0_i32_0 = arith.constant 0 : i32
    %c0_i32_1 = arith.constant 0 : i32
    return %c0_i32, %c0_i32_0 : i32, i32
  }
  func.func @transform_2(%arg0: i32, %arg1: i32) -> (i32, i32) {
    %c0_i32 = arith.constant 0 : i32
    %c0_i32_0 = arith.constant 0 : i32
    %c0_i32_1 = arith.constant 0 : i32
    return %c0_i32, %c0_i32_0 : i32, i32
  }
  func.func @transform_3(%arg0: i32, %arg1: i32) -> (i32, i32) {
    %c0_i32 = arith.constant 0 : i32
    %c0_i32_0 = arith.constant 0 : i32
    return %c0_i32, %arg1 : i32, i32
  }
  func.func @transform_4(%arg0: i32, %arg1: i32) -> (i32, i32) {
    %c0_i32 = arith.constant 0 : i32
    %c0_i32_0 = arith.constant 0 : i32
    return %c0_i32, %arg1 : i32, i32
  }
  func.func @transform_5(%arg0: i32, %arg1: i32) -> (i32, i32) {
    %c0_i32 = arith.constant 0 : i32
    return %arg0, %arg1 : i32, i32
  }
}

</mosaic_0001>

<llo_original>
// kernel: _prenorm_call.1
$region0: #{_prenorm_call.1}
  #allocation0 [shape = 'u32[]', space=smem, size = 0x4, offset = 0x4, fixed_abs, tag = 'smem constant byte address 0x4 - core index']
  #allocation1 [shape = 'u32[144,128]{1,0:T(1,128)}', space=vmem, size = 0x12000, scoped, tag = 'internal scratch']
  #allocation2 [shape = 'f32[16,128]{1,0:T(8,128)}', space=vmem, size = 0x2000, scoped, tag = 'scratch operand']
  %s0 = inlined_call_operand.vmem [shape: f32[16,128], index: 0, kind: input, shape index: {}]
  %s1 = inlined_call_operand.vmem [shape: f32[1,128], index: 1, kind: input, shape index: {}]
  %s2 = inlined_call_operand.vmem [shape: f32[1,128], index: 2, kind: input, shape index: {}]
  %s3 = inlined_call_operand.vmem [shape: f32[128,128], index: 3, kind: input, shape index: {}]
  %s4 = inlined_call_operand.vmem [shape: f32[1,128], index: 4, kind: input, shape index: {}]
  %s5 = inlined_call_operand.hbm [shape: f32[16,128], index: 5, kind: output, shape index: {}]
  %s6 = sld [smem:[#allocation0]]
  $region34: #{_prenorm_call.1} parent=0
    _
  %s8 = ssub.s32 1, %s6
  %s9 = scalar_select 0, %s8, %s6
  $region1: #{_prenorm_call.1} parent=0
    #allocation3 [shape = 'u8[8192]{0}', space=vmem, size = 0x2000, scoped, tag = 'output window, operand 0, single buffered']
    #allocation4 [shape = 's32[1]{0}', space=sflag, size = 0x4, scoped, tag = 'scoped memory for _prenorm_call.1']
    %10 = vsyncpa [#allocation4], 0
    // Predicated region
    $region2: #{_prenorm_call.1} parent=1 // pred_check
      _
    $region3: #{_prenorm_call.1} parent=1 // pred_check_branch
      %12 = sbr.rel (0) target = $region5
    $region4: #{_prenorm_call.1} parent=1 // pred_region
      _
    $region5: #{_prenorm_call.1} parent=1 // pred_fallthru
      _
    // Predicated region
    $region6: #{_prenorm_call.1} parent=1 // pred_check
      _
    $region7: #{_prenorm_call.1} parent=1 // pred_check_branch
      %14 = sbr.rel (0) target = $region9
    $region8: #{_prenorm_call.1} parent=1 // pred_region
      _
    $region9: #{_prenorm_call.1} parent=1 // pred_fallthru
      _
    // Predicated region
    $region10: #{_prenorm_call.1} parent=1 // pred_check
      _
    $region11: #{_prenorm_call.1} parent=1 // pred_check_branch
      %16 = sbr.rel (0) target = $region13
    $region12: #{_prenorm_call.1} parent=1 // pred_region
      _
    $region13: #{_prenorm_call.1} parent=1 // pred_fallthru
      _
    // Predicated region
    $region14: #{_prenorm_call.1} parent=1 // pred_check
      _
    $region15: #{_prenorm_call.1} parent=1 // pred_check_branch
      %18 = sbr.rel (0) target = $region17
    $region16: #{_prenorm_call.1} parent=1 // pred_region
      _
    $region17: #{_prenorm_call.1} parent=1 // pred_fallthru
      _
    // Predicated region
    $region18: #{_prenorm_call.1} parent=1 // pred_check
      _
    $region19: #{_prenorm_call.1} parent=1 // pred_check_branch
      %20 = sbr.rel (0) target = $region21
    $region20: #{_prenorm_call.1} parent=1 // pred_region
      _
    $region21: #{_prenorm_call.1} parent=1 // pred_fallthru
      _
    %p21 = scmp.eq.s32.totalorder 0, 0
    // Predicated region
    $region22: #{_prenorm_call.1} parent=1 // pred_check
      %p22 = pneg %p21
    $region23: #{_prenorm_call.1} parent=1 // pred_check_branch
      %24 = sbr.rel (%p22) target = $region25
    $region24: #{_prenorm_call.1} parent=1 // pred_region
      %v25 = vld [vmem:[%s0] sm:$0xff]
      %v26 = vld [vmem:[%s0 + $0x8] sm:$0xff]
      %27 = vadd.xlane.f32.xlu0 %v25
      %v28 = vpop.xlane.xlu0 %27
      %29 = vadd.xlane.f32.xlu0 %v26
      %v30 = vpop.xlane.xlu0 %29
      %v31 = vmul.f32 %v28, 0.03125
      %v32 = vmul.f32 %v30, 0.03125
      %v33 = vsub.f32 %v25, %v31
      %v34 = vsub.f32 %v26, %v32
      %v35 = vlaneseq
      %v36 = vand.u32 %v35, 127
      %vm37 = vcmp.lt.s32.totalorder %v36, 32
      %v38 = vsel %vm37, %v33, 0.0
      %v39 = vsel %vm37, %v34, 0.0
      %v40 = vmul.f32 %v38, %v38
      %v41 = vmul.f32 %v39, %v39
      %42 = vadd.xlane.f32.xlu0 %v40
      %v43 = vpop.xlane.xlu0 %42
      %44 = vadd.xlane.f32.xlu0 %v41
      %v45 = vpop.xlane.xlu0 %44
      %v46 = vmul.f32 %v43, 0.03125
      %v47 = vmul.f32 %v45, 0.03125
      %v48 = vadd.f32 %v46, 1e-05
      %v49 = vadd.f32 %v47, 1e-05
      %v50 = vrsqrt.pop %v48
      %v51 = vrsqrt.pop %v49
      %v52 = vmul.f32 %v38, %v50
      %v53 = vmul.f32 %v39, %v51
      %v54 = vld [vmem:[%s1] sm:$0x1]
      %v56 = vlaneseq
      %v57 = vshrl.u32 %v56, 7
      %v58 = vsub.s32 0, %v57
      %v59 = vrot.slane %v54, %v58
      %v61 = vmul.f32 %v52, %v59
      %v62 = vmul.f32 %v53, %v59
      %v63 = vld [vmem:[%s2] sm:$0x1]
      %v65 = vlaneseq
      %v66 = vshrl.u32 %v65, 7
      %v67 = vsub.s32 0, %v66
      %v68 = vrot.slane %v63, %v67
      %v70 = vadd.f32 %v61, %v68
      %v71 = vadd.f32 %v62, %v68
      %72 = vst [vmem:[#allocation2] sm:$0xff] %v70
      %73 = vst [vmem:[#allocation2 + $0x8] sm:$0xff] %v71
    $region25: #{_prenorm_call.1} parent=1 // pred_fallthru
      _
    %v74 = vld [vmem:[#allocation2] sm:$0xff]
    %v75 = vld [vmem:[#allocation2 + $0x8] sm:$0xff]
    %v76 = vld [vmem:[%s3] sm:$0xff]
    %v77 = vld [vmem:[%s3 + $0x8] sm:$0xff]
    %v78 = vld [vmem:[%s3 + $0x10] sm:$0xff]
    %v79 = vld [vmem:[%s3 + $0x18] sm:$0xff]
    %v80 = vld [vmem:[%s3 + $0x20] sm:$0xff]
    %v81 = vld [vmem:[%s3 + $0x28] sm:$0xff]
    %v82 = vld [vmem:[%s3 + $0x30] sm:$0xff]
    %v83 = vld [vmem:[%s3 + $0x38] sm:$0xff]
    %v84 = vld [vmem:[%s3 + $0x40] sm:$0xff]
    %v85 = vld [vmem:[%s3 + $0x48] sm:$0xff]
    %v86 = vld [vmem:[%s3 + $0x50] sm:$0xff]
    %v87 = vld [vmem:[%s3 + $0x58] sm:$0xff]
    %v88 = vld [vmem:[%s3 + $0x60] sm:$0xff]
    %v89 = vld [vmem:[%s3 + $0x68] sm:$0xff]
    %v90 = vld [vmem:[%s3 + $0x70] sm:$0xff]
    %v91 = vld [vmem:[%s3 + $0x78] sm:$0xff]
    %v92 = vld [vmem:[%s4] sm:$0x1]
    %v94 = vlaneseq
    %v95 = vshrl.u32 %v94, 7
    %v96 = vsub.s32 0, %v95
    %v97 = vrot.slane %v92, %v96
    %99 = vmatprep.subr.mxu0 0.0
    %100 = vmatpush1.msra.mxu0 %v76
    %101 = vmatprep.subr.mxu0 0.0
    %102 = vmatpush1.msra.mxu0 %v77
    %103 = vmatprep.subr.mxu0 0.0
    %104 = vmatpush1.msra.mxu0 %v78
    %105 = vmatprep.subr.mxu0 0.0
    %106 = vmatpush1.msra.mxu0 %v79
    %107 = vmatprep.subr.mxu0 0.0
    %108 = vmatpush1.msra.mxu0 %v80
    %109 = vmatprep.subr.mxu0 0.0
    %110 = vmatpush1.msra.mxu0 %v81
    %111 = vmatprep.subr.mxu0 0.0
    %112 = vmatpush1.msra.mxu0 %v82
    %113 = vmatprep.subr.mxu0 0.0
    %114 = vmatpush1.msra.mxu0 %v83
    %115 = vmatprep.subr.mxu0 0.0
    %116 = vmatpush1.msra.mxu0 %v84
    %117 = vmatprep.subr.mxu0 0.0
    %118 = vmatpush1.msra.mxu0 %v85
    %119 = vmatprep.subr.mxu0 0.0
    %120 = vmatpush1.msra.mxu0 %v86
    %121 = vmatprep.subr.mxu0 0.0
    %122 = vmatpush1.msra.mxu0 %v87
    %123 = vmatprep.subr.mxu0 0.0
    %124 = vmatpush1.msra.mxu0 %v88
    %125 = vmatprep.subr.mxu0 0.0
    %126 = vmatpush1.msra.mxu0 %v89
    %127 = vmatprep.subr.mxu0 0.0
    %128 = vmatpush1.msra.mxu0 %v90
    %129 = vmatprep.subr.mxu0 0.0
    %130 = vmatpush1.msra.mxu0 %v91
    %131 = vmatprep.subr.mxu0 0.0
    %132 = vmatpush1.msra.mxu0 0.0
    %133 = vmatprep.subr.mxu0 0.0
    %134 = vmatpush1.msra.mxu0 0.0
    %135 = vmatprep.subr.mxu0 0.0
    %136 = vmatpush1.msra.mxu0 0.0
    %137 = vmatprep.subr.mxu0 0.0
    %138 = vmatpush1.msra.mxu0 0.0
    %139 = vmatprep.subr.mxu0 0.0
    %140 = vmatpush1.msra.mxu0 0.0
    %141 = vmatprep.subr.mxu0 0.0
    %142 = vmatpush1.msra.mxu0 0.0
    %143 = vmatprep.subr.mxu0 0.0
    %144 = vmatpush1.msra.mxu0 0.0
    %145 = vmatprep.subr.mxu0 0.0
    %146 = vmatpush1.msra.mxu0 0.0
    %147 = vmatprep.subr.mxu0 0.0
    %148 = vmatpush1.msra.mxu0 0.0
    %149 = vmatprep.subr.mxu0 0.0
    %150 = vmatpush1.msra.mxu0 0.0
    %151 = vmatprep.subr.mxu0 0.0
    %152 = vmatpush1.msra.mxu0 0.0
    %153 = vmatprep.subr.mxu0 0.0
    %154 = vmatpush1.msra.mxu0 0.0
    %155 = vmatprep.subr.mxu0 0.0
    %156 = vmatpush1.msra.mxu0 0.0
    %157 = vmatprep.subr.mxu0 0.0
    %158 = vmatpush1.msra.mxu0 0.0
    %159 = vmatprep.subr.mxu0 0.0
    %160 = vmatpush1.msra.mxu0 0.0
    %161 = vmatprep.subr.mxu0 0.0
    %162 = vmatpush1.msra.mxu0 0.0
    %163 = vmatprep.mubr.f32.mxu0 0.0
    %164 = vmatmul.mubr.f32.gmra.mrb[0].mxu0 %v74
    %v165 = vpop.f32.mrb[0].mxu0
    %v166 = vadd.f32 %v97, %v165
    %v167 = vpop.f32.mrb[0].mxu0
    %168 = vmatprep.mubr.f32.mxu0 0.0
    %169 = vmatmul.mubr.f32.gmra.mrb[0].mxu0 %v75
    %v170 = vpop.f32.mrb[0].mxu0
    %v171 = vadd.f32 %v97, %v170
    %v172 = vpop.f32.mrb[0].mxu0
    %173 = vdwg.mxu0
    %174 = vst [vmem:[#allocation3] sm:$0xff] %v166
    %175 = vst [vmem:[#allocation3 + $0x8] sm:$0xff] %v171
    // Predicated region
    $region26: #{_prenorm_call.1} parent=1 // pred_check
      _
    $region27: #{_prenorm_call.1} parent=1 // pred_check_branch
      %177 = sbr.rel (0) target = $region29
    $region28: #{_prenorm_call.1} parent=1 // pred_region
      %s179 = ssub.s32 256, 256
      %180 = vsyncadd [#allocation4], %s179
      %s181 = sshll.u32 [#allocation3], 4
      %s182 = int_to_ptr.vmem [resolvable:$true] %s181
      %187 = dma.vmem_to_hbm [thread:$0]  %s182, 256, %s5, [#allocation4], 128, 128, 8
    $region29: #{_prenorm_call.1} parent=1 // pred_fallthru
      _
    // Predicated region
    $region30: #{_prenorm_call.1} parent=1 // pred_check
      _
    $region31: #{_prenorm_call.1} parent=1 // pred_check_branch
      %189 = sbr.rel (0) target = $region33
    $region32: #{_prenorm_call.1} parent=1 // pred_region
      %190 = dma.done [#allocation4], 256
    $region33: #{_prenorm_call.1} parent=1 // pred_fallthru
      _
    %191 = vsyncpa [#allocation4], 1

</llo_original>
